<compile_context>
chip_gen: v7x
topology: tpu7x:2x2x1
jax: 0.10.0
libtpu: 0.0.40
codegen_flags: <defaults>
</compile_context>

<pallas_src>
import functools
import math

import jax
import jax.numpy as jnp
from jax.experimental import pallas as pl
from jax.experimental.pallas import tpu as pltpu

INV_SQRT_2PI = 1.0 / math.sqrt(2.0 * math.pi)
LANE = 128
NUM_FEATS = 3  # x0, v, ypred


def _density_kernel(xs_ref, o_ref):
    # xs_ref: (blk_rows, 3*128) f32 packed lane-dense as [x0 | v | ypred].
    # 128-aligned static lane slices do not cross (8,128) tiles -> free views.
    x0 = xs_ref[:, 0:LANE]
    v = xs_ref[:, LANE:2 * LANE]
    ypred = xs_ref[:, 2 * LANE:3 * LANE]

    # genMean_torch, dgp == 'uniform2': mean = 2, except 0 where 2 < x0 < 2.2
    mean = jnp.where((x0 < 2.2) & (x0 > 2.0),
                     jnp.zeros_like(x0),
                     jnp.full_like(x0, 2.0))

    p1 = v - mean + ypred
    p2 = -v - mean + ypred

    o_ref[...] = (jnp.exp(-0.5 * p1 * p1) + jnp.exp(-0.5 * p2 * p2)) * INV_SQRT_2PI


def _choose_block_rows(rows, block_rows):
    """Pick a sublane-row tile: multiple of 8, <= block_rows, and (when there
    is enough work) small enough that the grid has >= 2 steps for v7x's two
    TensorCores."""
    blk = min(block_rows, ((rows + 7) // 8) * 8)
    if rows >= 16:
        half = (((rows + 1) // 2 + 7) // 8) * 8
        blk = min(blk, half)
    return max(8, blk)


def _density_pallas(packed, blk_rows):
    rows_padded = packed.shape[0]
    grid = (rows_padded // blk_rows,)
    n_elems = rows_padded * LANE
    return pl.pallas_call(
        _density_kernel,
        out_shape=jax.ShapeDtypeStruct((rows_padded, LANE), jnp.float32),
        grid_spec=pl.GridSpec(
            grid=grid,
            in_specs=[pl.BlockSpec((blk_rows, NUM_FEATS * LANE),
                                   lambda i: (i, 0))],
            out_specs=pl.BlockSpec((blk_rows, LANE), lambda i: (i, 0)),
        ),
        compiler_params=pltpu.CompilerParams(
            dimension_semantics=("parallel",)),
        cost_estimate=pl.CostEstimate(
            flops=10 * n_elems,
            transcendentals=2 * n_elems,
            bytes_accessed=4 * (NUM_FEATS + 1) * n_elems),
    )(packed)


@functools.partial(jax.jit, static_argnames=("block_rows",))
def close_form_density_forward(x, *, block_rows=2048):
    """closeFormdensityModel.forward.  x: (N, D>=2) float. Returns (N,) f32.

    The whole pipeline (column pack -> pallas kernel -> tail slice) is one jit
    so callers composing this inside a larger jit get the extraction and the
    [:N] slice fused away instead of extra HBM round-trips.
    """
    x = x.astype(jnp.float32)
    n, d = x.shape

    rows = pl.cdiv(n, LANE)
    blk_rows = _choose_block_rows(rows, block_rows)
    rows_padded = pl.cdiv(rows, blk_rows) * blk_rows
    total = rows_padded * LANE
    pad = total - n

    def slab(col):
        return jnp.pad(col, (0, pad)).reshape(rows_padded, LANE)

    # One contiguous (rows_padded, 384) fusion output = single input stream.
    packed = jnp.concatenate(
        [slab(x[:, 0]), slab(x[:, d - 2]), slab(x[:, d - 1])], axis=1)

    out_slab = _density_pallas(packed, blk_rows)
    return out_slab.reshape(total)[:n]


@functools.partial(jax.jit, static_argnames=("block_rows",))
def close_form_density_from_packed(packed, *, block_rows=2048):
    """Fast path when the producer already supplies the lane-dense packed
    feature slab (rows, 3*128) = [x0 | v | ypred]: skips the column-extraction
    fusion entirely (the largest HBM-byte saving).  Returns (rows, 128) f32."""
    packed = packed.astype(jnp.float32)
    rows = packed.shape[0]
    blk_rows = _choose_block_rows(rows, block_rows)
    rows_padded = pl.cdiv(rows, blk_rows) * blk_rows
    if rows_padded != rows:
        packed = jnp.pad(packed, ((0, rows_padded - rows), (0, 0)))
    return _density_pallas(packed, blk_rows)


def _reference(x):
    x0 = x[:, 0]
    v = x[:, -2]
    ypred = x[:, -1]
    mean = jnp.where((x0 < 2.2) & (x0 > 2.0), 0.0, 2.0)
    p1 = v - mean + ypred
    p2 = -v - mean + ypred
    return (jnp.exp(-0.5 * p1 ** 2) + jnp.exp(-0.5 * p2 ** 2)) * INV_SQRT_2PI


if __name__ == "__main__":
    key = jax.random.PRNGKey(0)
    N, D = 300, 5  # non-multiple of 128 to exercise padding / tail slicing
    k0, k1 = jax.random.split(key)
    # Column 0: x0 drawn like genX: uniform*4 - 1.5 (then a few rows forced
    # into the (2, 2.2) window so both mean branches are exercised).
    x0 = (jax.random.uniform(k0, (N, 1)) - 0.5) * 4.0 + 0.5
    x0 = x0.at[::7, 0].set(2.1)
    rest = jax.random.normal(k1, (N, D - 1))
    x = jnp.concatenate([x0, rest], axis=1).astype(jnp.float32)

    out = close_form_density_forward(x)
    out = jax.block_until_ready(out)

    ref = _reference(x)
    assert out.shape == (N,)
    assert jnp.allclose(out, ref, atol=1e-5, rtol=1e-5), "mismatch vs reference"

    # Also exercise a multi-block case (grid >= 2) to cover the tiled path.
    N2 = 4096
    k2, k3 = jax.random.split(k1)
    x2 = jnp.concatenate(
        [(jax.random.uniform(k2, (N2, 1)) - 0.5) * 4.0 + 0.5,
         jax.random.normal(k3, (N2, D - 1))], axis=1).astype(jnp.float32)
    out2 = jax.block_until_ready(close_form_density_forward(x2))
    assert jnp.allclose(out2, _reference(x2), atol=1e-5, rtol=1e-5)

    print("KERNEL_OK")
</pallas_src>

<mosaic_0001>
module attributes {stable_mosaic.version = 11 : i64} {
  func.func @_density_kernel(%arg0: i32, %arg1: memref<8x384xf32, #tpu.memory_space<vmem>>, %arg2: memref<8x128xf32, #tpu.memory_space<vmem>>) attributes {dimension_semantics = [#tpu.dimension_semantics<parallel>], iteration_bounds = array<i64: 1>, scalar_prefetch = 0 : i64, scratch_operands = 0 : i64, tpu.core_type = #tpu.core_type<tc>, window_params = [{transform_indices = @transform_0, window_bounds = array<i64: 8, 384>}, {transform_indices = @transform_1, window_bounds = array<i64: 8, 128>}]} {
    %c0 = arith.constant 0 : index
    %c0_0 = arith.constant 0 : index
    %0 = vector.load %arg1[%c0, %c0_0] : memref<8x384xf32, #tpu.memory_space<vmem>>, vector<8x128xf32>
    %c0_1 = arith.constant 0 : index
    %c128 = arith.constant 128 : index
    %1 = vector.load %arg1[%c0_1, %c128] : memref<8x384xf32, #tpu.memory_space<vmem>>, vector<8x128xf32>
    %c0_2 = arith.constant 0 : index
    %c256 = arith.constant 256 : index
    %2 = vector.load %arg1[%c0_2, %c256] : memref<8x384xf32, #tpu.memory_space<vmem>>, vector<8x128xf32>
    %cst = arith.constant 2.200000e+00 : f32
    %3 = vector.broadcast %cst : f32 to vector<8x128xf32>
    %4 = arith.cmpf olt, %0, %3 : vector<8x128xf32>
    %cst_3 = arith.constant 2.000000e+00 : f32
    %5 = vector.broadcast %cst_3 : f32 to vector<8x128xf32>
    %6 = arith.cmpf ogt, %0, %5 : vector<8x128xf32>
    %7 = arith.andi %4, %6 : vector<8x128xi1>
    %cst_4 = arith.constant 0.000000e+00 : f32
    %8 = vector.broadcast %cst_4 : f32 to vector<8x128xf32>
    %cst_5 = arith.constant 2.000000e+00 : f32
    %9 = vector.broadcast %cst_5 : f32 to vector<8x128xf32>
    %10 = arith.select %7, %8, %9 : vector<8x128xi1>, vector<8x128xf32>
    %11 = arith.subf %1, %10 : vector<8x128xf32>
    %12 = arith.addf %11, %2 : vector<8x128xf32>
    %cst_6 = arith.constant 0.000000e+00 : f32
    %13 = vector.broadcast %cst_6 : f32 to vector<8x128xf32>
    %14 = arith.subf %13, %1 : vector<8x128xf32>
    %15 = arith.subf %14, %10 : vector<8x128xf32>
    %16 = arith.addf %15, %2 : vector<8x128xf32>
    %cst_7 = arith.constant -5.000000e-01 : f32
    %17 = vector.broadcast %cst_7 : f32 to vector<8x128xf32>
    %18 = arith.mulf %17, %12 : vector<8x128xf32>
    %19 = arith.mulf %18, %12 : vector<8x128xf32>
    %20 = math.exp %19 : vector<8x128xf32>
    %cst_8 = arith.constant -5.000000e-01 : f32
    %21 = vector.broadcast %cst_8 : f32 to vector<8x128xf32>
    %22 = arith.mulf %21, %16 : vector<8x128xf32>
    %23 = arith.mulf %22, %16 : vector<8x128xf32>
    %24 = math.exp %23 : vector<8x128xf32>
    %25 = arith.addf %20, %24 : vector<8x128xf32>
    %cst_9 = arith.constant 0.398942292 : f32
    %26 = vector.broadcast %cst_9 : f32 to vector<8x128xf32>
    %27 = arith.mulf %25, %26 : vector<8x128xf32>
    %c0_10 = arith.constant 0 : index
    %c0_11 = arith.constant 0 : index
    %28 = vector.load %arg2[%c0_10, %c0_11] : memref<8x128xf32, #tpu.memory_space<vmem>>, vector<8x128xf32>
    tpu.vector_store %arg2[%c0_10, %c0_11], %27 {strides = array<i32>} : memref<8x128xf32, #tpu.memory_space<vmem>>, vector<8x128xf32>,
    return
  }
  func.func @transform_0(%arg0: i32) -> (i32, i32) {
    %c0_i32 = arith.constant 0 : i32
    %c0_i32_0 = arith.constant 0 : i32
    return %arg0, %c0_i32 : i32, i32
  }
  func.func @transform_1(%arg0: i32) -> (i32, i32) {
    %c0_i32 = arith.constant 0 : i32
    %c0_i32_0 = arith.constant 0 : i32
    return %arg0, %c0_i32 : i32, i32
  }
}

</mosaic_0001>

<llo_original>
// kernel: close_form_density_forward.1
$region0: #{close_form_density_forward.1}
  #allocation0 [shape = 'u32[]', space=smem, size = 0x4, offset = 0x4, fixed_abs, tag = 'smem constant byte address 0x4 - core index']
  #allocation1 [shape = 'u32[144,128]{1,0:T(1,128)}', space=vmem, size = 0x12000, scoped, tag = 'internal scratch']
  %s0 = inlined_call_operand.vmem [shape: f32[8,384], index: 0, kind: input, shape index: {}]
  %s1 = inlined_call_operand.vmem [shape: f32[8,128], index: 1, kind: output, shape index: {}]
  %s2 = sld [smem:[#allocation0]]
  $region14: #{close_form_density_forward.1} parent=0
    _
  %s4 = ssub.s32 1, %s2
  %s5 = scalar_select 0, %s4, %s2
  // Predicated region
  $region2: #{close_form_density_forward.1} parent=0 // pred_check
    _
  $region3: #{close_form_density_forward.1} parent=0 // pred_check_branch
    %7 = sbr.rel (0) target = $region5
  $region4: #{close_form_density_forward.1} parent=0 // pred_region
    _
  $region5: #{close_form_density_forward.1} parent=0 // pred_fallthru
    _
  %v8 = vld [vmem:[%s0] sm:$0xff]
  %v9 = vld [vmem:[%s0 + $0x8] sm:$0xff]
  %v10 = vld [vmem:[%s0 + $0x10] sm:$0xff]
  %vm11 = vcmp.lt.f32.partialorder %v8, 2.2
  %vm12 = vcmp.gt.f32.partialorder %v8, 2.0
  %vm13 = vmand %vm11, %vm12
  %v14 = vsel %vm13, 0.0, 2.0
  %v15 = vsub.f32 %v9, %v14
  %v16 = vadd.f32 %v15, %v10
  %v17 = vsub.f32 0.0, %v9
  %v18 = vsub.f32 %v17, %v14
  %v19 = vadd.f32 %v18, %v10
  %v20 = vmul.f32 %v16, -0.5
  %v21 = vmul.f32 %v20, %v16
  %v22 = vmul.f32 %v21, 1.442695
  %v23 = vpow.pop %v22
  %v24 = vmul.f32 %v19, -0.5
  %v25 = vmul.f32 %v24, %v19
  %v26 = vmul.f32 %v25, 1.442695
  %v27 = vpow.pop %v26
  %v28 = vadd.f32 %v23, %v27
  %v29 = vmul.f32 %v28, 0.3989423
  %30 = vst [vmem:[%s1] sm:$0xff] %v29
  // Predicated region
  $region6: #{close_form_density_forward.1} parent=0 // pred_check
    _
  $region7: #{close_form_density_forward.1} parent=0 // pred_check_branch
    %32 = sbr.rel (0) target = $region9
  $region8: #{close_form_density_forward.1} parent=0 // pred_region
    _
  $region9: #{close_form_density_forward.1} parent=0 // pred_fallthru
    _
  // Predicated region
  $region10: #{close_form_density_forward.1} parent=0 // pred_check
    _
  $region11: #{close_form_density_forward.1} parent=0 // pred_check_branch
    %34 = sbr.rel (0) target = $region13
  $region12: #{close_form_density_forward.1} parent=0 // pred_region
    _
  $region13: #{close_form_density_forward.1} parent=0 // pred_fallthru
    _

</llo_original>
